<compile_context>
chip_gen: v7x
topology: tpu7x:2x2x1
jax: 0.10.0
libtpu: 0.0.40
codegen_flags: <defaults>
</compile_context>

<pallas_src>
import jax
import jax.numpy as jnp
from jax.experimental import pallas as pl
from jax.experimental.pallas import tpu as pltpu


def _pointwise_conv1d_kernel(x_ref, w_ref, b_ref, o_ref):
    # x_ref: (C, TL)  one batch element's channel-by-position tile
    # w_ref: (O, C)   Conv1d weight, kernel_size=1 axis squeezed
    # b_ref: (O, 1)   bias column, broadcast across the lane (L) axis
    # o_ref: (O, TL)
    acc = jnp.dot(w_ref[...], x_ref[...], preferred_element_type=jnp.float32)
    o_ref[...] = (acc + b_ref[...]).astype(o_ref.dtype)


def _pick_tile_l(B, C, O, L, itemsize):
    """Lane-dense L tile bounded by a VMEM budget, with enough grid steps."""
    if L <= 128:
        # Full-extent block: allowed even when L is not a multiple of 128.
        return L

    # Budget the double-buffered (C, tl) x block and (O, tl) out block plus
    # the resident weight/bias, keeping well under the default scoped VMEM
    # limit on every generation (v7x: 32 MiB scoped / 64 MiB physical).
    budget = 24 * 1024 * 1024
    resident = 2 * (O * C + O) * 4  # weight + bias, double-buffered, tiny
    max_tl = (budget - resident) // (2 * (C + O) * itemsize)
    tl = (max_tl // 128) * 128
    tl = max(128, min(tl, 1024))            # prefer >=512B..4KB per-row DMA runs
    tl = min(tl, pl.cdiv(L, 128) * 128)      # no point in a block wider than L

    # Guarantee enough grid steps so both v7x TensorCores get work.
    while tl > 128 and B * pl.cdiv(L, tl) < 4:
        tl //= 2
    return tl


def classification_head_forward(x, weight, bias):
    """Pallas implementation of ClassificationHead.forward.

    x:      (B, in_c, L)
    weight: (num_classes, in_c, 1)  -- PyTorch Conv1d layout (or (num_classes, in_c))
    bias:   (num_classes,)
    returns (B, num_classes, L)
    """
    B, C, L = x.shape
    w2d = weight.reshape(weight.shape[0], C)   # drop kernel_size=1 axis
    O = w2d.shape[0]
    b2d = bias.reshape(O, 1).astype(jnp.float32)

    itemsize = jnp.dtype(x.dtype).itemsize
    tl = _pick_tile_l(B, C, O, L, itemsize)
    grid = (B, pl.cdiv(L, tl))

    cost = pl.CostEstimate(
        flops=2 * B * O * C * L,
        bytes_accessed=itemsize * B * L * (C + O) + 4 * (O * C + O),
        transcendentals=0,
    )

    return pl.pallas_call(
        _pointwise_conv1d_kernel,
        out_shape=jax.ShapeDtypeStruct((B, O, L), x.dtype),
        grid=grid,
        in_specs=[
            # x: squeeze the batch dim, tile L (ragged last block is masked).
            pl.BlockSpec((None, C, tl), lambda b, l: (b, 0, l)),
            # weight / bias: full (tiny) arrays, resident every step.
            pl.BlockSpec((O, C), lambda b, l: (0, 0)),
            pl.BlockSpec((O, 1), lambda b, l: (0, 0)),
        ],
        out_specs=pl.BlockSpec((None, O, tl), lambda b, l: (b, 0, l)),
        compiler_params=pltpu.CompilerParams(
            dimension_semantics=("parallel", "parallel"),
        ),
        cost_estimate=cost,
    )(x, w2d, b2d)


def init_classification_head_params(key, in_c, num_classes):
    """Deterministic init mirroring nn.Conv1d(in_c, num_classes, kernel_size=1)."""
    kw, kb = jax.random.split(key)
    bound = 1.0 / (in_c ** 0.5)  # fan_in = in_c * kernel_size(=1)
    weight = jax.random.uniform(
        kw, (num_classes, in_c, 1), jnp.float32, minval=-bound, maxval=bound
    )
    bias = jax.random.uniform(
        kb, (num_classes,), jnp.float32, minval=-bound, maxval=bound
    )
    return {"conv.weight": weight, "conv.bias": bias}


if __name__ == "__main__":
    num_classes = 7
    in_c = 32
    batch = 2
    seq_len = 16

    key = jax.random.PRNGKey(0)
    k_param, k_x = jax.random.split(key)

    params = init_classification_head_params(k_param, in_c, num_classes)
    x = jax.random.normal(k_x, (batch, in_c, seq_len), dtype=jnp.float32)

    out = classification_head_forward(x, params["conv.weight"], params["conv.bias"])
    out = jax.block_until_ready(out)

    # Reference: Conv1d(kernel_size=1) == einsum over channels + bias.
    w2d = params["conv.weight"].reshape(num_classes, in_c)
    ref = jnp.einsum("oc,bcl->bol", w2d, x) + params["conv.bias"][None, :, None]

    assert out.shape == (batch, num_classes, seq_len)
    assert out.dtype == x.dtype
    assert bool(jnp.allclose(out, ref, atol=1e-5, rtol=1e-5))

    print("KERNEL_OK")
</pallas_src>

<mosaic_0001>
module attributes {stable_mosaic.version = 11 : i64} {
  func.func @_pointwise_conv1d_kernel(%arg0: i32, %arg1: i32, %arg2: memref<1x32x16xf32, #tpu.memory_space<vmem>>, %arg3: memref<7x32xf32, #tpu.memory_space<vmem>>, %arg4: memref<7x1xf32, #tpu.memory_space<vmem>>, %arg5: memref<1x7x16xf32, #tpu.memory_space<vmem>>) attributes {dimension_semantics = [#tpu.dimension_semantics<parallel>, #tpu.dimension_semantics<parallel>], iteration_bounds = array<i64: 2, 1>, scalar_prefetch = 0 : i64, scratch_operands = 0 : i64, tpu.core_type = #tpu.core_type<tc>, window_params = [{transform_indices = @transform_0, window_bounds = array<i64: 1, 32, 16>}, {pipeline_mode = #tpu.pipeline_mode<synchronous>, transform_indices = @transform_1, window_bounds = array<i64: 7, 32>}, {pipeline_mode = #tpu.pipeline_mode<synchronous>, transform_indices = @transform_2, window_bounds = array<i64: 7, 1>}, {transform_indices = @transform_3, window_bounds = array<i64: 1, 7, 16>}]} {
    %c0 = arith.constant 0 : index
    %c0_0 = arith.constant 0 : index
    %0 = vector.load %arg3[%c0, %c0_0] : memref<7x32xf32, #tpu.memory_space<vmem>>, vector<7x32xf32>
    %c0_1 = arith.constant 0 : index
    %c0_2 = arith.constant 0 : index
    %c0_3 = arith.constant 0 : index
    %1 = vector.load %arg2[%c0_1, %c0_2, %c0_3] : memref<1x32x16xf32, #tpu.memory_space<vmem>>, vector<1x32x16xf32>
    %2 = vector.shape_cast %1 : vector<1x32x16xf32> to vector<32x16xf32>
    %cst = arith.constant dense<0.000000e+00> : vector<7x16xf32>
    %3 = tpu.matmul %0, %2, %cst {dimension_numbers = #tpu.dot_dimension_numbers<[1], [0], [0], [1], [0, 0, 1, 1], [], []>} : vector<7x32xf32>, vector<32x16xf32>, vector<7x16xf32> -> vector<7x16xf32>
    %c0_4 = arith.constant 0 : index
    %c0_5 = arith.constant 0 : index
    %4 = vector.load %arg4[%c0_4, %c0_5] : memref<7x1xf32, #tpu.memory_space<vmem>>, vector<7x1xf32>
    %5 = vector.broadcast %4 : vector<7x1xf32> to vector<7x16xf32>
    %6 = arith.addf %3, %5 : vector<7x16xf32>
    %c0_6 = arith.constant 0 : index
    %c0_7 = arith.constant 0 : index
    %c0_8 = arith.constant 0 : index
    %7 = vector.load %arg5[%c0_6, %c0_7, %c0_8] : memref<1x7x16xf32, #tpu.memory_space<vmem>>, vector<1x7x16xf32>
    %8 = vector.shape_cast %7 : vector<1x7x16xf32> to vector<7x16xf32>
    %9 = vector.shape_cast %6 : vector<7x16xf32> to vector<1x7x16xf32>
    tpu.vector_store %arg5[%c0_6, %c0_7, %c0_8], %9 {strides = array<i32>} : memref<1x7x16xf32, #tpu.memory_space<vmem>>, vector<1x7x16xf32>,
    return
  }
  func.func @transform_0(%arg0: i32, %arg1: i32) -> (i32, i32, i32) {
    %c0_i32 = arith.constant 0 : i32
    %c0_i32_0 = arith.constant 0 : i32
    return %arg0, %c0_i32, %arg1 : i32, i32, i32
  }
  func.func @transform_1(%arg0: i32, %arg1: i32) -> (i32, i32) {
    %c0_i32 = arith.constant 0 : i32
    %c0_i32_0 = arith.constant 0 : i32
    %c0_i32_1 = arith.constant 0 : i32
    return %c0_i32, %c0_i32_0 : i32, i32
  }
  func.func @transform_2(%arg0: i32, %arg1: i32) -> (i32, i32) {
    %c0_i32 = arith.constant 0 : i32
    %c0_i32_0 = arith.constant 0 : i32
    %c0_i32_1 = arith.constant 0 : i32
    return %c0_i32, %c0_i32_0 : i32, i32
  }
  func.func @transform_3(%arg0: i32, %arg1: i32) -> (i32, i32, i32) {
    %c0_i32 = arith.constant 0 : i32
    %c0_i32_0 = arith.constant 0 : i32
    return %arg0, %c0_i32, %arg1 : i32, i32, i32
  }
}

</mosaic_0001>

<llo_original>
// kernel: tpu_custom_call.1
$region0: #{tpu_custom_call.1}
  #allocation0 [shape = 'u32[]', space=smem, size = 0x4, offset = 0x4, fixed_abs, tag = 'smem constant byte address 0x4 - core index']
  #allocation1 [shape = 'u32[144,128]{1,0:T(1,128)}', space=vmem, size = 0x12000, scoped, tag = 'internal scratch']
  %s0 = inlined_call_operand.vmem [shape: f32[2,32,16], index: 0, kind: input, shape index: {}]
  %s1 = inlined_call_operand.vmem [shape: f32[7,32], index: 1, kind: input, shape index: {}]
  %s2 = inlined_call_operand.vmem [shape: f32[7,1], index: 2, kind: input, shape index: {}]
  %s3 = inlined_call_operand.vmem [shape: f32[2,7,16], index: 3, kind: output, shape index: {}]
  %s4 = sld [smem:[#allocation0]]
  $region45: #{tpu_custom_call.1} parent=0
    _
  %s6 = ssub.s32 1, %s4
  %s7 = scalar_select 0, %s6, %s4
  loop: start=0, step=1, limit=4
  $region2: #{tpu_custom_call.1} parent=0 // loop_pre_header
    _
  $region3: #{tpu_custom_call.1} parent=0 // loop_header
    %s9 = sphi 0, %s13
    %p10 = scmp.ge.s32.totalorder %s9, 4
    %s16 = sphi 0, %s28
    %s17 = sphi 0, %s24
    %s18 = sphi 0, %s16
    %s19 = sphi 0, %s17
    %s20 = sphi 0, %s18
    %s21 = sphi 0, %s19
    %s33 = sphi 0, %s35
    %s36 = sphi 0, %s33
    %s37 = sphi 0, %s36
    %s53 = sphi 0, %s37
    %s57 = sphi 0, %s57
    %s59 = sphi 0, %s57
    %s60 = sphi 0, %s59
    %s74 = sphi 0, %s60
    %s78 = sphi 0, %s78
    %s80 = sphi 0, %s78
    %s81 = sphi 0, %s80
    %s95 = sphi 0, %s81
    %s103 = sphi 0, %s105
    %s106 = sphi 0, %s103
    %s107 = sphi 0, %s106
    %s123 = sphi 0, %s107
  $region4: #{tpu_custom_call.1} parent=0 // loop_header_branch
    %12 = sbr.rel (%p10) target = $region8
  $region5: #{tpu_custom_call.1} parent=0 // loop_body
    %s14 = ssub.s32 %s9, 1
    %s15 = ssub.s32 %s9, 2
    %s22 = sadd.s32 1, %s17
    %p23 = scmp.ge.s32.totalorder %s22, 1
    %s24 = scalar_select %p23, 0, %s22
    %s25 = sadd.s32 1, %s16
    %s26 = scalar_select %p23, %s25, %s16
    %p27 = scmp.ge.s32.totalorder %s26, 2
    %s28 = scalar_select %p27, 0, %s26
    %s29 = ssub.s32 %s16, %s28
    %s30 = ssub.s32 %s17, %s24
    %s31 = sor.u32 %s29, %s30
    %p32 = scmp.eq.s32.totalorder %s31, 0
    %s34 = sadd.s32 %s33, 1
    %s35 = scalar_select %p32, %s33, %s34
    %p38 = pneg %p32
    %p39 = scmp.eq.s32.totalorder %s9, 1
    %p40 = por %p38, %p39
    %p41 = scmp.ne.s32.totalorder %s33, %s36
    %p42 = scmp.eq.s32.totalorder %s9, 0
    %p43 = por %p41, %p42
    %p44 = scmp.ne.s32.totalorder %s33, %s36
    %p45 = scmp.eq.s32.totalorder %s14, 1
    %p46 = por %p44, %p45
    %p47 = scmp.ne.s32.totalorder %s36, %s37
    %p48 = scmp.eq.s32.totalorder %s14, 0
    %p49 = por %p47, %p48
    %p50 = scmp.ne.s32.totalorder %s36, %s37
    %p51 = scmp.eq.s32.totalorder %s15, 1
    %p52 = por %p50, %p51
    %p54 = scmp.ne.s32.totalorder %s37, %s53
    %p55 = scmp.eq.s32.totalorder %s15, 0
    %p56 = por %p54, %p55
    %s58 = sadd.s32 %s57, 1
    %p61 = scmp.eq.s32.totalorder %s9, 1
    %p62 = scmp.ne.s32.totalorder %s57, %s59
    %p63 = scmp.eq.s32.totalorder %s9, 0
    %p64 = por %p62, %p63
    %p65 = scmp.ne.s32.totalorder %s57, %s59
    %p66 = scmp.eq.s32.totalorder %s14, 1
    %p67 = por %p65, %p66
    %p68 = scmp.ne.s32.totalorder %s59, %s60
    %p69 = scmp.eq.s32.totalorder %s14, 0
    %p70 = por %p68, %p69
    %p71 = scmp.ne.s32.totalorder %s59, %s60
    %p72 = scmp.eq.s32.totalorder %s15, 1
    %p73 = por %p71, %p72
    %p75 = scmp.ne.s32.totalorder %s60, %s74
    %p76 = scmp.eq.s32.totalorder %s15, 0
    %p77 = por %p75, %p76
    %s79 = sadd.s32 %s78, 1
    %p82 = scmp.eq.s32.totalorder %s9, 1
    %p83 = scmp.ne.s32.totalorder %s78, %s80
    %p84 = scmp.eq.s32.totalorder %s9, 0
    %p85 = por %p83, %p84
    %p86 = scmp.ne.s32.totalorder %s78, %s80
    %p87 = scmp.eq.s32.totalorder %s14, 1
    %p88 = por %p86, %p87
    %p89 = scmp.ne.s32.totalorder %s80, %s81
    %p90 = scmp.eq.s32.totalorder %s14, 0
    %p91 = por %p89, %p90
    %p92 = scmp.ne.s32.totalorder %s80, %s81
    %p93 = scmp.eq.s32.totalorder %s15, 1
    %p94 = por %p92, %p93
    %p96 = scmp.ne.s32.totalorder %s81, %s95
    %p97 = scmp.eq.s32.totalorder %s15, 0
    %p98 = por %p96, %p97
    %s99 = ssub.s32 %s16, %s28
    %s100 = ssub.s32 %s17, %s24
    %s101 = sor.u32 %s99, %s100
    %p102 = scmp.eq.s32.totalorder %s101, 0
    %s104 = sadd.s32 %s103, 1
    %s105 = scalar_select %p102, %s103, %s104
    %p108 = pneg %p102
    %p109 = scmp.eq.s32.totalorder %s9, 1
    %p110 = por %p108, %p109
    %p111 = scmp.ne.s32.totalorder %s103, %s106
    %p112 = scmp.eq.s32.totalorder %s9, 0
    %p113 = por %p111, %p112
    %p114 = scmp.ne.s32.totalorder %s103, %s106
    %p115 = scmp.eq.s32.totalorder %s14, 1
    %p116 = por %p114, %p115
    %p117 = scmp.ne.s32.totalorder %s106, %s107
    %p118 = scmp.eq.s32.totalorder %s14, 0
    %p119 = por %p117, %p118
    %p120 = scmp.ne.s32.totalorder %s106, %s107
    %p121 = scmp.eq.s32.totalorder %s15, 1
    %p122 = por %p120, %p121
    %p124 = scmp.ne.s32.totalorder %s107, %s123
    %p125 = scmp.eq.s32.totalorder %s15, 0
    %p126 = por %p124, %p125
    %p127 = scmp.le.s32.totalorder 1, %s9
    %p128 = scmp.lt.s32.totalorder %s9, 3
    %p129 = pnand %p127, %p128
    %p130 = pneg %p129
    // Predicated region
    $region9: #{tpu_custom_call.1} parent=5 // pred_check
      _
    $region10: #{tpu_custom_call.1} parent=5 // pred_check_branch
      %132 = sbr.rel (%p129) target = $region12
    $region11: #{tpu_custom_call.1} parent=5 // pred_region
      %s133 = ssub.s32 %s9, 1
      // Predicated region
      $region13: #{tpu_custom_call.1} parent=11 // pred_check
        %p134 = pneg %p70
      $region14: #{tpu_custom_call.1} parent=11 // pred_check_branch
        %136 = sbr.rel (%p134) target = $region16
      $region15: #{tpu_custom_call.1} parent=11 // pred_region
        _
      $region16: #{tpu_custom_call.1} parent=11 // pred_fallthru
        _
      // Predicated region
      $region17: #{tpu_custom_call.1} parent=11 // pred_check
        %p137 = pneg %p91
      $region18: #{tpu_custom_call.1} parent=11 // pred_check_branch
        %139 = sbr.rel (%p137) target = $region20
      $region19: #{tpu_custom_call.1} parent=11 // pred_region
        _
      $region20: #{tpu_custom_call.1} parent=11 // pred_fallthru
        _
    $region12: #{tpu_custom_call.1} parent=5 // pred_fallthru
      _
    %p140 = scmp.lt.s32.totalorder %s9, 2
    // Predicated region
    $region21: #{tpu_custom_call.1} parent=5 // pred_check
      %p141 = pneg %p140
    $region22: #{tpu_custom_call.1} parent=5 // pred_check_branch
      %143 = sbr.rel (%p141) target = $region24
    $region23: #{tpu_custom_call.1} parent=5 // pred_region
      // Predicated region
      $region25: #{tpu_custom_call.1} parent=23 // pred_check
        %p144 = pneg %p43
      $region26: #{tpu_custom_call.1} parent=23 // pred_check_branch
        %146 = sbr.rel (%p144) target = $region28
      $region27: #{tpu_custom_call.1} parent=23 // pred_region
        %p147 = scmp.lt.s32.totalorder %s16, 1
        %s148 = scalar_select %p147, %s16, 1
        %p149 = scmp.lt.s32.totalorder %s17, 0
        %s150 = scalar_select %p149, %s17, 0
        %s151 = smul.addr %s148, 4
        %s152 = sadd.s32 %s150, %s151
        %s153 = smul.addr %s152, 8
        %s154 = scalar_lea.vmem %s0, %s153
      $region28: #{tpu_custom_call.1} parent=23 // pred_fallthru
        _
    $region24: #{tpu_custom_call.1} parent=5 // pred_fallthru
      _
    %p155 = scmp.le.s32.totalorder 1, %s9
    %p156 = scmp.lt.s32.totalorder %s9, 3
    %p157 = pnand %p155, %p156
    %p158 = pneg %p157
    // Predicated region
    $region29: #{tpu_custom_call.1} parent=5 // pred_check
      _
    $region30: #{tpu_custom_call.1} parent=5 // pred_check_branch
      %160 = sbr.rel (%p157) target = $region32
    $region31: #{tpu_custom_call.1} parent=5 // pred_region
      %s161 = ssub.s32 %s9, 1
      %p162 = scmp.lt.s32.totalorder %s18, 1
      %s163 = scalar_select %p162, %s18, 1
      %p164 = scmp.lt.s32.totalorder %s19, 0
      %s165 = scalar_select %p164, %s19, 0
      %s166 = smul.addr %s163, 4
      %s167 = sadd.s32 %s165, %s166
      %s168 = smul.addr %s167, 8
      %s169 = scalar_lea.vmem %s0, %s168
      %p170 = pneg %p49
      %p171 = pneg %p46
      %p172 = pneg %p70
      %p173 = pneg %p67
      %p174 = pneg %p91
      %p175 = pneg %p88
      %p176 = pneg %p119
      %p177 = pneg %p116
      %p178 = scmp.lt.s32.totalorder %s18, 1
      %s179 = scalar_select %p178, %s18, 1
      %p180 = scmp.lt.s32.totalorder %s19, 0
      %s181 = scalar_select %p180, %s19, 0
      %s182 = sadd.s32 %s181, %s179
      %s183 = smul.addr %s182, 8
      %s184 = scalar_lea.vmem %s3, %s183
      %p185 = scmp.lt.s32.totalorder %s18, 1
      %s186 = scalar_select %p185, %s18, 1
      %p187 = scmp.lt.s32.totalorder %s19, 0
      %s188 = scalar_select %p187, %s19, 0
      %s189 = smul.addr %s186, 4
      %s190 = sadd.s32 %s188, %s189
      %s191 = smul.addr %s190, 8
      %s192 = scalar_lea.vmem %s0, %s191
      %p193 = scmp.lt.s32.totalorder %s18, 1
      %s194 = scalar_select %p193, %s18, 1
      %p195 = scmp.lt.s32.totalorder %s19, 0
      %s196 = scalar_select %p195, %s19, 0
      %s197 = sadd.s32 %s196, %s194
      %s198 = smul.addr %s197, 8
      %s199 = scalar_lea.vmem %s3, %s198
      %v200 = vld [vmem:[%s1] sm:$0x7f]
      %v201 = vld [vmem:[%s192] sm:$0xff]
      %v202 = vld [vmem:[%s192 + $0x8] sm:$0xff]
      %v203 = vld [vmem:[%s192 + $0x10] sm:$0xff]
      %v204 = vld [vmem:[%s192 + $0x18] sm:$0xff]
      %v205 = vld [vmem:[%s2] sm:$0x7f]
      %207 = vset.pattern.permute.xlu0 0
      %208 = vperm.xlu0 %207, %v205
      %v209 = vpop.permute.xlu0 %208
      %vm211 = vcmask 261120
      %v213 = vsel %vm211, %v200, 0
      %215 = vmatprep.subr.mxu0 0.0
      %216 = vmatpush1.msra.mxu0 %v201
      %217 = vmatprep.subr.mxu0 0.0
      %218 = vmatpush1.msra.mxu0 %v202
      %219 = vmatprep.subr.mxu0 0.0
      %220 = vmatpush1.msra.mxu0 %v203
      %221 = vmatprep.subr.mxu0 0.0
      %222 = vmatpush1.msra.mxu0 %v204
      %223 = vmatprep.subr.mxu0 0.0
      %224 = vmatpush1.msra.mxu0 0.0
      %225 = vmatprep.subr.mxu0 0.0
      %226 = vmatpush1.msra.mxu0 0.0
      %227 = vmatprep.subr.mxu0 0.0
      %228 = vmatpush1.msra.mxu0 0.0
      %229 = vmatprep.subr.mxu0 0.0
      %230 = vmatpush1.msra.mxu0 0.0
      %231 = vmatprep.subr.mxu0 0.0
      %232 = vmatpush1.msra.mxu0 0.0
      %233 = vmatprep.subr.mxu0 0.0
      %234 = vmatpush1.msra.mxu0 0.0
      %235 = vmatprep.subr.mxu0 0.0
      %236 = vmatpush1.msra.mxu0 0.0
      %237 = vmatprep.subr.mxu0 0.0
      %238 = vmatpush1.msra.mxu0 0.0
      %239 = vmatprep.subr.mxu0 0.0
      %240 = vmatpush1.msra.mxu0 0.0
      %241 = vmatprep.subr.mxu0 0.0
      %242 = vmatpush1.msra.mxu0 0.0
      %243 = vmatprep.subr.mxu0 0.0
      %244 = vmatpush1.msra.mxu0 0.0
      %245 = vmatprep.subr.mxu0 0.0
      %246 = vmatpush1.msra.mxu0 0.0
      %247 = vmatprep.subr.mxu0 0.0
      %248 = vmatpush1.msra.mxu0 0.0
      %249 = vmatprep.subr.mxu0 0.0
      %250 = vmatpush1.msra.mxu0 0.0
      %251 = vmatprep.subr.mxu0 0.0
      %252 = vmatpush1.msra.mxu0 0.0
      %253 = vmatprep.subr.mxu0 0.0
      %254 = vmatpush1.msra.mxu0 0.0
      %255 = vmatprep.subr.mxu0 0.0
      %256 = vmatpush1.msra.mxu0 0.0
      %257 = vmatprep.subr.mxu0 0.0
      %258 = vmatpush1.msra.mxu0 0.0
      %259 = vmatprep.subr.mxu0 0.0
      %260 = vmatpush1.msra.mxu0 0.0
      %261 = vmatprep.subr.mxu0 0.0
      %262 = vmatpush1.msra.mxu0 0.0
      %263 = vmatprep.subr.mxu0 0.0
      %264 = vmatpush1.msra.mxu0 0.0
      %265 = vmatprep.subr.mxu0 0.0
      %266 = vmatpush1.msra.mxu0 0.0
      %267 = vmatprep.subr.mxu0 0.0
      %268 = vmatpush1.msra.mxu0 0.0
      %269 = vmatprep.subr.mxu0 0.0
      %270 = vmatpush1.msra.mxu0 0.0
      %271 = vmatprep.subr.mxu0 0.0
      %272 = vmatpush1.msra.mxu0 0.0
      %273 = vmatprep.subr.mxu0 0.0
      %274 = vmatpush1.msra.mxu0 0.0
      %275 = vmatprep.subr.mxu0 0.0
      %276 = vmatpush1.msra.mxu0 0.0
      %277 = vmatprep.subr.mxu0 0.0
      %278 = vmatpush1.msra.mxu0 0.0
      %279 = vmatprep.mubr.f32.mxu0 0.0
      %280 = vmatmul.mubr.f32.gmra.mrb[0].mxu0 %v213
      %v281 = vpop.f32.mrb[0].mxu0
      %v282 = vadd.f32 %v209, %v281
      %v283 = vpop.f32.mrb[0].mxu0
      %284 = vdwg.mxu0
      %vm285 = vcmask 129024
      %286 = vst.msk [vmem:[%s199] sm:$0x7f] %vm285, %v282
      %p287 = scmp.lt.s32.totalorder %s18, 1
      %s288 = scalar_select %p287, %s18, 1
      %p289 = scmp.lt.s32.totalorder %s19, 0
      %s290 = scalar_select %p289, %s19, 0
      %s291 = sadd.s32 %s290, %s288
      %s292 = smul.addr %s291, 8
      %s293 = scalar_lea.vmem %s3, %s292
      // Predicated region
      $region33: #{tpu_custom_call.1} parent=31 // pred_check
        %p294 = pneg %p116
      $region34: #{tpu_custom_call.1} parent=31 // pred_check_branch
        %296 = sbr.rel (%p294) target = $region36
      $region35: #{tpu_custom_call.1} parent=31 // pred_region
        _
      $region36: #{tpu_custom_call.1} parent=31 // pred_fallthru
        _
    $region32: #{tpu_custom_call.1} parent=5 // pred_fallthru
      _
    %p297 = scmp.le.s32.totalorder 2, %s9
    // Predicated region
    $region37: #{tpu_custom_call.1} parent=5 // pred_check
      %p298 = pneg %p297
    $region38: #{tpu_custom_call.1} parent=5 // pred_check_branch
      %300 = sbr.rel (%p298) target = $region40
    $region39: #{tpu_custom_call.1} parent=5 // pred_region
      %s301 = ssub.s32 %s9, 2
      // Predicated region
      $region41: #{tpu_custom_call.1} parent=39 // pred_check
        %p302 = pneg %p122
      $region42: #{tpu_custom_call.1} parent=39 // pred_check_branch
        %304 = sbr.rel (%p302) target = $region44
      $region43: #{tpu_custom_call.1} parent=39 // pred_region
        %p305 = scmp.lt.s32.totalorder %s20, 1
        %s306 = scalar_select %p305, %s20, 1
        %p307 = scmp.lt.s32.totalorder %s21, 0
        %s308 = scalar_select %p307, %s21, 0
        %s309 = sadd.s32 %s308, %s306
        %s310 = smul.addr %s309, 8
        %s311 = scalar_lea.vmem %s3, %s310
      $region44: #{tpu_custom_call.1} parent=39 // pred_fallthru
        _
    $region40: #{tpu_custom_call.1} parent=5 // pred_fallthru
      _
  $region6: #{tpu_custom_call.1} parent=0 // loop_footer
    %s13 = sadd.s32 1, %s9
  $region7: #{tpu_custom_call.1} parent=0 // loop_footer_branch
    %8 = sbr.rel target = $region3
  $region8: #{tpu_custom_call.1} parent=0 // loop_exit
    _

</llo_original>
